<compile_context>
chip_gen: v7x
topology: tpu7x:2x2x1
jax: 0.10.0
libtpu: 0.0.40
codegen_flags: <defaults>
</compile_context>

<pallas_src>
import functools

import jax
import jax.numpy as jnp
from jax.experimental import pallas as pl
from jax.experimental.pallas import tpu as pltpu

# Logical (PyTorch) dims.
D_IN, D_H1, D_H2, D_CLS = 18, 200, 100, 2
# Lane-aligned padded dims.
P_IN, P_H1, P_H2 = 128, 256, 128
# Output slab: 32 lanes, x_hat in cols 0:18, y_hat in cols 24:26.
P_OUT = 32
YH_COL = 24
# Column in the fused [W3 | Wc] output where the 2 classifier logits live.
CLS_COL = 224


def _round_up(n, m):
    return (n + m - 1) // m * m


def sae_kernel(x_ref,
               w1_ref, b1_ref,
               w2_ref, b2_ref,
               w3c_ref, b3c_ref,
               w4_ref, b4_ref,
               out_ref,
               xpad_ref):
    # Zero-extend the narrow (tb, 18) input tile to 128 lanes in VMEM so the
    # first matmul runs on a lane-aligned contraction dim.  (Zero-fill each
    # step: the scratch is not guaranteed to start at pid 0 on every core.)
    xpad_ref[...] = jnp.zeros_like(xpad_ref)
    xpad_ref[:, :D_IN] = x_ref[...]
    x = xpad_ref[...]                                              # (tb, 128)

    # Encoder.
    en1 = jnp.maximum(
        jnp.dot(x, w1_ref[...], preferred_element_type=jnp.float32) + b1_ref[...],
        0.0)                                                       # (tb, 256)
    # dropout(en1) -> identity (eval mode)
    en2 = jnp.maximum(
        jnp.dot(en1, w2_ref[...], preferred_element_type=jnp.float32) + b2_ref[...],
        0.0)                                                       # (tb, 128)

    # Fused decoder-layer-1 + classifier: cols 0:200 = de1 pre-act,
    # cols 224:226 = classifier logits, everything else exactly 0.
    h = jnp.dot(en2, w3c_ref[...], preferred_element_type=jnp.float32) + b3c_ref[...]
    de1 = jnp.maximum(h, 0.0)                                      # (tb, 256)
    # (relu'd logit columns feed zero rows of W4p, so they are harmless.)
    # dropout(de1) -> identity (eval mode)

    x_hat = jnp.maximum(
        jnp.dot(de1, w4_ref[...], preferred_element_type=jnp.float32) + b4_ref[...],
        0.0)                                                       # (tb, 32); cols 18:32 exactly 0

    # 2-class log_softmax, closed form: y0 = -softplus(l1-l0), y1 = -softplus(l0-l1).
    l0 = h[:, CLS_COL:CLS_COL + 1]                                 # (tb, 1)
    l1 = h[:, CLS_COL + 1:CLS_COL + 2]                             # (tb, 1)

    def softplus(z):
        return jnp.maximum(z, 0.0) + jnp.log1p(jnp.exp(-jnp.abs(z)))

    y0 = -softplus(l1 - l0)
    y1 = -softplus(l0 - l1)

    # Single lane-dense 32-wide output slab; splice y_hat via two narrow stores.
    out_ref[...] = x_hat.astype(out_ref.dtype)
    out_ref[:, YH_COL:YH_COL + 1] = y0.astype(out_ref.dtype)
    out_ref[:, YH_COL + 1:YH_COL + 2] = y1.astype(out_ref.dtype)


def pack_params(params):
    """Zero-pad weights to lane-aligned shapes and fuse [W3 | Wc] once at init."""
    (w1, b1, w2, b2, w3, b3, w4, b4, wc, bc) = params
    f32 = jnp.float32
    w1p = jnp.zeros((P_IN, P_H1), f32).at[:D_IN, :D_H1].set(w1)
    b1p = jnp.zeros((1, P_H1), f32).at[:, :D_H1].set(b1)
    w2p = jnp.zeros((P_H1, P_H2), f32).at[:D_H1, :D_H2].set(w2)
    b2p = jnp.zeros((1, P_H2), f32).at[:, :D_H2].set(b2)
    w3cp = (jnp.zeros((P_H2, P_H1), f32)
            .at[:D_H2, :D_H1].set(w3)
            .at[:D_H2, CLS_COL:CLS_COL + D_CLS].set(wc))
    b3cp = (jnp.zeros((1, P_H1), f32)
            .at[:, :D_H1].set(b3)
            .at[:, CLS_COL:CLS_COL + D_CLS].set(bc))
    w4p = jnp.zeros((P_H1, P_OUT), f32).at[:D_H1, :D_IN].set(w4)
    b4p = jnp.zeros((1, P_OUT), f32).at[:, :D_IN].set(b4)
    return (w1p, b1p, w2p, b2p, w3cp, b3cp, w4p, b4p)


@functools.partial(jax.jit, static_argnames=("tb",))
def sae_forward(x, packed_params, tb=2048):
    """x: (B, 18) float32. packed_params: output of pack_params(). Returns (y_hat, x_hat)."""
    (w1p, b1p, w2p, b2p, w3cp, b3cp, w4p, b4p) = packed_params
    x = x.astype(jnp.float32)
    B = x.shape[0]

    b8 = _round_up(B, 8)
    tb_eff = _round_up(min(tb, b8), 8)
    # Guarantee >= 2 grid steps whenever the batch allows it so both v7x
    # TensorCores get work (batch axis is "parallel"); harmless on v5e/v6e.
    if tb_eff >= b8 and b8 >= 16:
        tb_eff = _round_up(b8 // 2, 8)
    B_pad = _round_up(B, tb_eff)

    # Only batch rows are padded (with zeros); the feature dim stays at 18
    # so the input DMA moves 72 B/row instead of 512 B/row.
    xp = x if B_pad == B else jnp.pad(x, ((0, B_pad - B), (0, 0)))

    def w_spec(a):
        return pl.BlockSpec(a.shape, lambda i: (0, 0))   # whole weight resident in VMEM

    grid = (B_pad // tb_eff,)
    out = pl.pallas_call(
        sae_kernel,
        out_shape=jax.ShapeDtypeStruct((B_pad, P_OUT), jnp.float32),
        grid_spec=pltpu.PrefetchScalarGridSpec(
            num_scalar_prefetch=0,
            grid=grid,
            in_specs=[
                pl.BlockSpec((tb_eff, D_IN), lambda i: (i, 0)),   # narrow x, batch-tiled
                w_spec(w1p), w_spec(b1p),
                w_spec(w2p), w_spec(b2p),
                w_spec(w3cp), w_spec(b3cp),
                w_spec(w4p), w_spec(b4p),
            ],
            out_specs=pl.BlockSpec((tb_eff, P_OUT), lambda i: (i, 0)),
            scratch_shapes=[pltpu.VMEM((tb_eff, P_IN), jnp.float32)],  # zero-extended x
        ),
        compiler_params=pltpu.CompilerParams(
            dimension_semantics=("parallel",),            # batch axis shards across TCs (v7x)
            vmem_limit_bytes=32 * 1024 * 1024),
    )(xp, w1p, b1p, w2p, b2p, w3cp, b3cp, w4p, b4p)

    y_hat = out[:B, YH_COL:YH_COL + D_CLS]
    x_hat = out[:B, :D_IN]
    return y_hat, x_hat


def init_params(key):
    """Deterministic init mimicking nn.Linear (uniform +/- 1/sqrt(fan_in)).
    Weights stored transposed: (in_features, out_features)."""
    def linear(k, fan_in, fan_out):
        kw, kb = jax.random.split(k)
        bound = 1.0 / jnp.sqrt(fan_in)
        w = jax.random.uniform(kw, (fan_in, fan_out), jnp.float32, -bound, bound)
        b = jax.random.uniform(kb, (1, fan_out), jnp.float32, -bound, bound)
        return w, b

    k1, k2, k3, k4, k5 = jax.random.split(key, 5)
    w1, b1 = linear(k1, D_IN, D_H1)    # fc_en1: 18 -> 200
    w2, b2 = linear(k2, D_H1, D_H2)    # fc_en2: 200 -> 100
    w3, b3 = linear(k3, D_H2, D_H1)    # fc_de1: 100 -> 200
    w4, b4 = linear(k4, D_H1, D_IN)    # fc_de2: 200 -> 18
    wc, bc = linear(k5, D_H2, D_CLS)   # cl1:    100 -> 2
    return (w1, b1, w2, b2, w3, b3, w4, b4, wc, bc)


def reference_forward(x, params):
    (w1, b1, w2, b2, w3, b3, w4, b4, wc, bc) = params
    en1 = jax.nn.relu(x @ w1 + b1)
    en2 = jax.nn.relu(en1 @ w2 + b2)
    de1 = jax.nn.relu(en2 @ w3 + b3)
    x_hat = jax.nn.relu(de1 @ w4 + b4)
    logits = en2 @ wc + bc
    y_hat = jax.nn.log_softmax(logits, axis=1)
    return y_hat, x_hat


if __name__ == "__main__":
    key = jax.random.PRNGKey(0)
    kp, kx, kx2 = jax.random.split(key, 3)
    params = init_params(kp)
    packed = pack_params(params)

    # Case 1: B=64, default (large) tile -> split into 2 grid steps by the
    # v7x two-core rule.
    B = 64
    x = jax.random.normal(kx, (B, D_IN), jnp.float32)
    y_ref, xh_ref = reference_forward(x, params)

    y_hat, x_hat = sae_forward(x, packed)
    jax.block_until_ready((y_hat, x_hat))
    assert y_hat.shape == (B, D_CLS) and x_hat.shape == (B, D_IN)
    assert jnp.allclose(y_hat, y_ref, atol=1e-5, rtol=1e-5)
    assert jnp.allclose(x_hat, xh_ref, atol=1e-5, rtol=1e-5)

    # Case 2: ragged batch (53) + small tile -> exercises batch padding and a
    # longer multi-step grid.
    B2 = 53
    x2 = jax.random.normal(kx2, (B2, D_IN), jnp.float32)
    y_ref2, xh_ref2 = reference_forward(x2, params)
    y_hat2, x_hat2 = sae_forward(x2, packed, tb=16)
    jax.block_until_ready((y_hat2, x_hat2))
    assert y_hat2.shape == (B2, D_CLS) and x_hat2.shape == (B2, D_IN)
    assert jnp.allclose(y_hat2, y_ref2, atol=1e-5, rtol=1e-5)
    assert jnp.allclose(x_hat2, xh_ref2, atol=1e-5, rtol=1e-5)

    print("KERNEL_OK")
</pallas_src>

<mosaic_0001>
module attributes {stable_mosaic.version = 11 : i64} {
  func.func @sae_kernel(%arg0: i32, %arg1: memref<32x18xf32, #tpu.memory_space<vmem>>, %arg2: memref<128x256xf32, #tpu.memory_space<vmem>>, %arg3: memref<1x256xf32, #tpu.memory_space<vmem>>, %arg4: memref<256x128xf32, #tpu.memory_space<vmem>>, %arg5: memref<1x128xf32, #tpu.memory_space<vmem>>, %arg6: memref<128x256xf32, #tpu.memory_space<vmem>>, %arg7: memref<1x256xf32, #tpu.memory_space<vmem>>, %arg8: memref<256x32xf32, #tpu.memory_space<vmem>>, %arg9: memref<1x32xf32, #tpu.memory_space<vmem>>, %arg10: memref<32x32xf32, #tpu.memory_space<vmem>>, %arg11: memref<32x128xf32, #tpu.memory_space<vmem>>) attributes {dimension_semantics = [#tpu.dimension_semantics<parallel>], iteration_bounds = array<i64: 2>, scalar_prefetch = 0 : i64, scratch_operands = 1 : i64, tpu.core_type = #tpu.core_type<tc>, window_params = [{transform_indices = @transform_0, window_bounds = array<i64: 32, 18>}, {pipeline_mode = #tpu.pipeline_mode<synchronous>, transform_indices = @transform_1, window_bounds = array<i64: 128, 256>}, {pipeline_mode = #tpu.pipeline_mode<synchronous>, transform_indices = @transform_2, window_bounds = array<i64: 1, 256>}, {pipeline_mode = #tpu.pipeline_mode<synchronous>, transform_indices = @transform_3, window_bounds = array<i64: 256, 128>}, {pipeline_mode = #tpu.pipeline_mode<synchronous>, transform_indices = @transform_4, window_bounds = array<i64: 1, 128>}, {pipeline_mode = #tpu.pipeline_mode<synchronous>, transform_indices = @transform_5, window_bounds = array<i64: 128, 256>}, {pipeline_mode = #tpu.pipeline_mode<synchronous>, transform_indices = @transform_6, window_bounds = array<i64: 1, 256>}, {pipeline_mode = #tpu.pipeline_mode<synchronous>, transform_indices = @transform_7, window_bounds = array<i64: 256, 32>}, {pipeline_mode = #tpu.pipeline_mode<synchronous>, transform_indices = @transform_8, window_bounds = array<i64: 1, 32>}, {transform_indices = @transform_9, window_bounds = array<i64: 32, 32>}]} {
    %cst = arith.constant 0.000000e+00 : f32
    %0 = vector.broadcast %cst : f32 to vector<32x128xf32>
    %c0 = arith.constant 0 : index
    %c0_0 = arith.constant 0 : index
    %1 = vector.load %arg11[%c0, %c0_0] : memref<32x128xf32, #tpu.memory_space<vmem>>, vector<32x128xf32>
    tpu.vector_store %arg11[%c0, %c0_0], %0 {strides = array<i32>} : memref<32x128xf32, #tpu.memory_space<vmem>>, vector<32x128xf32>,
    %c0_1 = arith.constant 0 : index
    %c0_2 = arith.constant 0 : index
    %2 = vector.load %arg1[%c0_1, %c0_2] : memref<32x18xf32, #tpu.memory_space<vmem>>, vector<32x18xf32>
    %c0_3 = arith.constant 0 : index
    %c0_4 = arith.constant 0 : index
    %3 = vector.load %arg11[%c0_3, %c0_4] : memref<32x128xf32, #tpu.memory_space<vmem>>, vector<32x18xf32>
    tpu.vector_store %arg11[%c0_3, %c0_4], %2 {strides = array<i32>} : memref<32x128xf32, #tpu.memory_space<vmem>>, vector<32x18xf32>,
    %c0_5 = arith.constant 0 : index
    %c0_6 = arith.constant 0 : index
    %4 = vector.load %arg11[%c0_5, %c0_6] : memref<32x128xf32, #tpu.memory_space<vmem>>, vector<32x128xf32>
    %c0_7 = arith.constant 0 : index
    %c0_8 = arith.constant 0 : index
    %5 = vector.load %arg2[%c0_7, %c0_8] : memref<128x256xf32, #tpu.memory_space<vmem>>, vector<128x256xf32>
    %cst_9 = arith.constant dense<0.000000e+00> : vector<32x256xf32>
    %6 = tpu.matmul %4, %5, %cst_9 {dimension_numbers = #tpu.dot_dimension_numbers<[1], [0], [0], [1], [0, 0, 1, 1], [], []>} : vector<32x128xf32>, vector<128x256xf32>, vector<32x256xf32> -> vector<32x256xf32>
    %c0_10 = arith.constant 0 : index
    %c0_11 = arith.constant 0 : index
    %7 = vector.load %arg3[%c0_10, %c0_11] : memref<1x256xf32, #tpu.memory_space<vmem>>, vector<1x256xf32>
    %8 = vector.broadcast %7 : vector<1x256xf32> to vector<32x256xf32>
    %9 = arith.addf %6, %8 : vector<32x256xf32>
    %cst_12 = arith.constant 0.000000e+00 : f32
    %10 = vector.broadcast %cst_12 : f32 to vector<32x256xf32>
    %11 = arith.maximumf %9, %10 : vector<32x256xf32>
    %c0_13 = arith.constant 0 : index
    %c0_14 = arith.constant 0 : index
    %12 = vector.load %arg4[%c0_13, %c0_14] : memref<256x128xf32, #tpu.memory_space<vmem>>, vector<256x128xf32>
    %cst_15 = arith.constant dense<0.000000e+00> : vector<32x128xf32>
    %13 = tpu.matmul %11, %12, %cst_15 {dimension_numbers = #tpu.dot_dimension_numbers<[1], [0], [0], [1], [0, 0, 1, 1], [], []>} : vector<32x256xf32>, vector<256x128xf32>, vector<32x128xf32> -> vector<32x128xf32>
    %c0_16 = arith.constant 0 : index
    %c0_17 = arith.constant 0 : index
    %14 = vector.load %arg5[%c0_16, %c0_17] : memref<1x128xf32, #tpu.memory_space<vmem>>, vector<1x128xf32>
    %15 = vector.broadcast %14 : vector<1x128xf32> to vector<32x128xf32>
    %16 = arith.addf %13, %15 : vector<32x128xf32>
    %cst_18 = arith.constant 0.000000e+00 : f32
    %17 = vector.broadcast %cst_18 : f32 to vector<32x128xf32>
    %18 = arith.maximumf %16, %17 : vector<32x128xf32>
    %c0_19 = arith.constant 0 : index
    %c0_20 = arith.constant 0 : index
    %19 = vector.load %arg6[%c0_19, %c0_20] : memref<128x256xf32, #tpu.memory_space<vmem>>, vector<128x256xf32>
    %cst_21 = arith.constant dense<0.000000e+00> : vector<32x256xf32>
    %20 = tpu.matmul %18, %19, %cst_21 {dimension_numbers = #tpu.dot_dimension_numbers<[1], [0], [0], [1], [0, 0, 1, 1], [], []>} : vector<32x128xf32>, vector<128x256xf32>, vector<32x256xf32> -> vector<32x256xf32>
    %c0_22 = arith.constant 0 : index
    %c0_23 = arith.constant 0 : index
    %21 = vector.load %arg7[%c0_22, %c0_23] : memref<1x256xf32, #tpu.memory_space<vmem>>, vector<1x256xf32>
    %22 = vector.broadcast %21 : vector<1x256xf32> to vector<32x256xf32>
    %23 = arith.addf %20, %22 : vector<32x256xf32>
    %cst_24 = arith.constant 0.000000e+00 : f32
    %24 = vector.broadcast %cst_24 : f32 to vector<32x256xf32>
    %25 = arith.maximumf %23, %24 : vector<32x256xf32>
    %c0_25 = arith.constant 0 : index
    %c0_26 = arith.constant 0 : index
    %26 = vector.load %arg8[%c0_25, %c0_26] : memref<256x32xf32, #tpu.memory_space<vmem>>, vector<256x32xf32>
    %cst_27 = arith.constant dense<0.000000e+00> : vector<32x32xf32>
    %27 = tpu.matmul %25, %26, %cst_27 {dimension_numbers = #tpu.dot_dimension_numbers<[1], [0], [0], [1], [0, 0, 1, 1], [], []>} : vector<32x256xf32>, vector<256x32xf32>, vector<32x32xf32> -> vector<32x32xf32>
    %c0_28 = arith.constant 0 : index
    %c0_29 = arith.constant 0 : index
    %28 = vector.load %arg9[%c0_28, %c0_29] : memref<1x32xf32, #tpu.memory_space<vmem>>, vector<1x32xf32>
    %29 = vector.broadcast %28 : vector<1x32xf32> to vector<32x32xf32>
    %30 = arith.addf %27, %29 : vector<32x32xf32>
    %cst_30 = arith.constant 0.000000e+00 : f32
    %31 = vector.broadcast %cst_30 : f32 to vector<32x32xf32>
    %32 = arith.maximumf %30, %31 : vector<32x32xf32>
    %33 = vector.extract_strided_slice %23 {offsets = [0, 224], sizes = [32, 1], strides = [1, 1]} : vector<32x256xf32> to vector<32x1xf32>
    %34 = vector.extract_strided_slice %23 {offsets = [0, 225], sizes = [32, 1], strides = [1, 1]} : vector<32x256xf32> to vector<32x1xf32>
    %35 = arith.subf %34, %33 : vector<32x1xf32>
    %cst_31 = arith.constant 0.000000e+00 : f32
    %36 = vector.broadcast %cst_31 : f32 to vector<32x1xf32>
    %37 = arith.maximumf %35, %36 : vector<32x1xf32>
    %38 = math.absf %35 : vector<32x1xf32>
    %cst_32 = arith.constant 0.000000e+00 : f32
    %39 = vector.broadcast %cst_32 : f32 to vector<32x1xf32>
    %40 = arith.subf %39, %38 : vector<32x1xf32>
    %41 = math.exp %40 : vector<32x1xf32>
    %42 = math.log1p %41 : vector<32x1xf32>
    %43 = arith.addf %37, %42 : vector<32x1xf32>
    %cst_33 = arith.constant 0.000000e+00 : f32
    %44 = vector.broadcast %cst_33 : f32 to vector<32x1xf32>
    %45 = arith.subf %44, %43 : vector<32x1xf32>
    %46 = arith.subf %33, %34 : vector<32x1xf32>
    %cst_34 = arith.constant 0.000000e+00 : f32
    %47 = vector.broadcast %cst_34 : f32 to vector<32x1xf32>
    %48 = arith.maximumf %46, %47 : vector<32x1xf32>
    %49 = math.absf %46 : vector<32x1xf32>
    %cst_35 = arith.constant 0.000000e+00 : f32
    %50 = vector.broadcast %cst_35 : f32 to vector<32x1xf32>
    %51 = arith.subf %50, %49 : vector<32x1xf32>
    %52 = math.exp %51 : vector<32x1xf32>
    %53 = math.log1p %52 : vector<32x1xf32>
    %54 = arith.addf %48, %53 : vector<32x1xf32>
    %cst_36 = arith.constant 0.000000e+00 : f32
    %55 = vector.broadcast %cst_36 : f32 to vector<32x1xf32>
    %56 = arith.subf %55, %54 : vector<32x1xf32>
    %c0_37 = arith.constant 0 : index
    %c0_38 = arith.constant 0 : index
    %57 = vector.load %arg10[%c0_37, %c0_38] : memref<32x32xf32, #tpu.memory_space<vmem>>, vector<32x32xf32>
    tpu.vector_store %arg10[%c0_37, %c0_38], %32 {strides = array<i32>} : memref<32x32xf32, #tpu.memory_space<vmem>>, vector<32x32xf32>,
    %c0_39 = arith.constant 0 : index
    %c24 = arith.constant 24 : index
    %58 = vector.load %arg10[%c0_39, %c24] : memref<32x32xf32, #tpu.memory_space<vmem>>, vector<32x1xf32>
    tpu.vector_store %arg10[%c0_39, %c24], %45 {strides = array<i32>} : memref<32x32xf32, #tpu.memory_space<vmem>>, vector<32x1xf32>,
    %c0_40 = arith.constant 0 : index
    %c25 = arith.constant 25 : index
    %59 = vector.load %arg10[%c0_40, %c25] : memref<32x32xf32, #tpu.memory_space<vmem>>, vector<32x1xf32>
    tpu.vector_store %arg10[%c0_40, %c25], %56 {strides = array<i32>} : memref<32x32xf32, #tpu.memory_space<vmem>>, vector<32x1xf32>,
    return
  }
  func.func @transform_0(%arg0: i32) -> (i32, i32) {
    %c0_i32 = arith.constant 0 : i32
    %c0_i32_0 = arith.constant 0 : i32
    return %arg0, %c0_i32 : i32, i32
  }
  func.func @transform_1(%arg0: i32) -> (i32, i32) {
    %c0_i32 = arith.constant 0 : i32
    %c0_i32_0 = arith.constant 0 : i32
    %c0_i32_1 = arith.constant 0 : i32
    return %c0_i32, %c0_i32_0 : i32, i32
  }
  func.func @transform_2(%arg0: i32) -> (i32, i32) {
    %c0_i32 = arith.constant 0 : i32
    %c0_i32_0 = arith.constant 0 : i32
    %c0_i32_1 = arith.constant 0 : i32
    return %c0_i32, %c0_i32_0 : i32, i32
  }
  func.func @transform_3(%arg0: i32) -> (i32, i32) {
    %c0_i32 = arith.constant 0 : i32
    %c0_i32_0 = arith.constant 0 : i32
    %c0_i32_1 = arith.constant 0 : i32
    return %c0_i32, %c0_i32_0 : i32, i32
  }
  func.func @transform_4(%arg0: i32) -> (i32, i32) {
    %c0_i32 = arith.constant 0 : i32
    %c0_i32_0 = arith.constant 0 : i32
    %c0_i32_1 = arith.constant 0 : i32
    return %c0_i32, %c0_i32_0 : i32, i32
  }
  func.func @transform_5(%arg0: i32) -> (i32, i32) {
    %c0_i32 = arith.constant 0 : i32
    %c0_i32_0 = arith.constant 0 : i32
    %c0_i32_1 = arith.constant 0 : i32
    return %c0_i32, %c0_i32_0 : i32, i32
  }
  func.func @transform_6(%arg0: i32) -> (i32, i32) {
    %c0_i32 = arith.constant 0 : i32
    %c0_i32_0 = arith.constant 0 : i32
    %c0_i32_1 = arith.constant 0 : i32
    return %c0_i32, %c0_i32_0 : i32, i32
  }
  func.func @transform_7(%arg0: i32) -> (i32, i32) {
    %c0_i32 = arith.constant 0 : i32
    %c0_i32_0 = arith.constant 0 : i32
    %c0_i32_1 = arith.constant 0 : i32
    return %c0_i32, %c0_i32_0 : i32, i32
  }
  func.func @transform_8(%arg0: i32) -> (i32, i32) {
    %c0_i32 = arith.constant 0 : i32
    %c0_i32_0 = arith.constant 0 : i32
    %c0_i32_1 = arith.constant 0 : i32
    return %c0_i32, %c0_i32_0 : i32, i32
  }
  func.func @transform_9(%arg0: i32) -> (i32, i32) {
    %c0_i32 = arith.constant 0 : i32
    %c0_i32_0 = arith.constant 0 : i32
    return %arg0, %c0_i32 : i32, i32
  }
}

</mosaic_0001>

<llo_original>
// kernel: sae_forward.1
$region0: #{sae_forward.1}
  #allocation0 [shape = 'u32[]', space=smem, size = 0x4, offset = 0x4, fixed_abs, tag = 'smem constant byte address 0x4 - core index']
  #allocation1 [shape = 'u32[144,128]{1,0:T(1,128)}', space=vmem, size = 0x12000, scoped, tag = 'internal scratch']
  #allocation2 [shape = 'f32[32,128]{1,0:T(8,128)}', space=vmem, size = 0x4000, scoped, tag = 'scratch operand']
  %s0 = inlined_call_operand.vmem [shape: f32[64,18], index: 0, kind: input, shape index: {}]
  %s1 = inlined_call_operand.vmem [shape: f32[128,256], index: 1, kind: input, shape index: {}]
  %s2 = inlined_call_operand.vmem [shape: f32[1,256], index: 2, kind: input, shape index: {}]
  %s3 = inlined_call_operand.hbm [shape: f32[256,128], index: 3, kind: input, shape index: {}]
  %s4 = inlined_call_operand.vmem [shape: f32[1,128], index: 4, kind: input, shape index: {}]
  %s5 = inlined_call_operand.hbm [shape: f32[128,256], index: 5, kind: input, shape index: {}]
  %s6 = inlined_call_operand.vmem [shape: f32[1,256], index: 6, kind: input, shape index: {}]
  %s7 = inlined_call_operand.vmem [shape: f32[256,32], index: 7, kind: input, shape index: {}]
  %s8 = inlined_call_operand.vmem [shape: f32[1,32], index: 8, kind: input, shape index: {}]
  %s9 = inlined_call_operand.vmem [shape: f32[64,32], index: 9, kind: output, shape index: {}]
  %s10 = sld [smem:[#allocation0]]
  $region77: #{sae_forward.1} parent=0
    _
  %s12 = ssub.s32 1, %s10
  %s13 = scalar_select 0, %s12, %s10
  $region1: #{sae_forward.1} parent=0
    #allocation3 [shape = 'u8[131072]{0}', space=vmem, size = 0x20000, scoped, tag = 'input window, operand 3, single buffered']
    #allocation4 [shape = 's32[2]{0}', space=sflag, size = 0x8, scoped, tag = 'scoped memory for sae_forward.1']
    #allocation5 [shape = 'u8[131072]{0}', space=vmem, size = 0x20000, scoped, tag = 'input window, operand 5, single buffered']
    #allocation6 [shape = 's32[1]{0}', space=sflag, size = 0x4, scoped, tag = 'scoped memory for sae_forward.1']
    %14 = vsyncpa [#allocation4], 0
    %15 = vsyncpa [#allocation6], 0
    loop: start=0, step=1, limit=4
    $region2: #{sae_forward.1} parent=1 // loop_pre_header
      _
    $region3: #{sae_forward.1} parent=1 // loop_header
      %s17 = sphi 0, %s21
      %p18 = scmp.ge.s32.totalorder %s17, 4
      %s27 = sphi 0, %s29
      %s30 = sphi 0, %s27
      %s31 = sphi 0, %s30
      %s47 = sphi 0, %s31
      %s51 = sphi 0, %s51
      %s53 = sphi 0, %s51
      %s54 = sphi 0, %s53
      %s68 = sphi 0, %s54
      %s72 = sphi 0, %s72
      %s74 = sphi 0, %s72
      %s75 = sphi 0, %s74
      %s89 = sphi 0, %s75
      %s93 = sphi 0, %s93
      %s95 = sphi 0, %s93
      %s96 = sphi 0, %s95
      %s110 = sphi 0, %s96
      %s114 = sphi 0, %s114
      %s116 = sphi 0, %s114
      %s117 = sphi 0, %s116
      %s131 = sphi 0, %s117
      %s135 = sphi 0, %s135
      %s137 = sphi 0, %s135
      %s138 = sphi 0, %s137
      %s152 = sphi 0, %s138
      %s156 = sphi 0, %s156
      %s158 = sphi 0, %s156
      %s159 = sphi 0, %s158
      %s173 = sphi 0, %s159
      %s177 = sphi 0, %s177
      %s179 = sphi 0, %s177
      %s180 = sphi 0, %s179
      %s194 = sphi 0, %s180
      %s198 = sphi 0, %s198
      %s200 = sphi 0, %s198
      %s201 = sphi 0, %s200
      %s215 = sphi 0, %s201
      %s221 = sphi 0, %s223
      %s224 = sphi 0, %s221
      %s225 = sphi 0, %s224
      %s241 = sphi 0, %s225
    $region4: #{sae_forward.1} parent=1 // loop_header_branch
      %20 = sbr.rel (%p18) target = $region8
    $region5: #{sae_forward.1} parent=1 // loop_body
      %s22 = ssub.s32 %s17, 1
      %s23 = ssub.s32 %s17, 2
      %s24 = sadd.s32 %s17, 1
      %s25 = ssub.s32 %s17, %s24
      %p26 = scmp.eq.s32.totalorder %s25, 0
      %s28 = sadd.s32 %s27, 1
      %s29 = scalar_select %p26, %s27, %s28
      %p32 = pneg %p26
      %p33 = scmp.eq.s32.totalorder %s17, 1
      %p34 = por %p32, %p33
      %p35 = scmp.ne.s32.totalorder %s27, %s30
      %p36 = scmp.eq.s32.totalorder %s17, 0
      %p37 = por %p35, %p36
      %p38 = scmp.ne.s32.totalorder %s27, %s30
      %p39 = scmp.eq.s32.totalorder %s22, 1
      %p40 = por %p38, %p39
      %p41 = scmp.ne.s32.totalorder %s30, %s31
      %p42 = scmp.eq.s32.totalorder %s22, 0
      %p43 = por %p41, %p42
      %p44 = scmp.ne.s32.totalorder %s30, %s31
      %p45 = scmp.eq.s32.totalorder %s23, 1
      %p46 = por %p44, %p45
      %p48 = scmp.ne.s32.totalorder %s31, %s47
      %p49 = scmp.eq.s32.totalorder %s23, 0
      %p50 = por %p48, %p49
      %s52 = sadd.s32 %s51, 1
      %p55 = scmp.eq.s32.totalorder %s17, 1
      %p56 = scmp.ne.s32.totalorder %s51, %s53
      %p57 = scmp.eq.s32.totalorder %s17, 0
      %p58 = por %p56, %p57
      %p59 = scmp.ne.s32.totalorder %s51, %s53
      %p60 = scmp.eq.s32.totalorder %s22, 1
      %p61 = por %p59, %p60
      %p62 = scmp.ne.s32.totalorder %s53, %s54
      %p63 = scmp.eq.s32.totalorder %s22, 0
      %p64 = por %p62, %p63
      %p65 = scmp.ne.s32.totalorder %s53, %s54
      %p66 = scmp.eq.s32.totalorder %s23, 1
      %p67 = por %p65, %p66
      %p69 = scmp.ne.s32.totalorder %s54, %s68
      %p70 = scmp.eq.s32.totalorder %s23, 0
      %p71 = por %p69, %p70
      %s73 = sadd.s32 %s72, 1
      %p76 = scmp.eq.s32.totalorder %s17, 1
      %p77 = scmp.ne.s32.totalorder %s72, %s74
      %p78 = scmp.eq.s32.totalorder %s17, 0
      %p79 = por %p77, %p78
      %p80 = scmp.ne.s32.totalorder %s72, %s74
      %p81 = scmp.eq.s32.totalorder %s22, 1
      %p82 = por %p80, %p81
      %p83 = scmp.ne.s32.totalorder %s74, %s75
      %p84 = scmp.eq.s32.totalorder %s22, 0
      %p85 = por %p83, %p84
      %p86 = scmp.ne.s32.totalorder %s74, %s75
      %p87 = scmp.eq.s32.totalorder %s23, 1
      %p88 = por %p86, %p87
      %p90 = scmp.ne.s32.totalorder %s75, %s89
      %p91 = scmp.eq.s32.totalorder %s23, 0
      %p92 = por %p90, %p91
      %s94 = sadd.s32 %s93, 1
      %p97 = scmp.eq.s32.totalorder %s17, 1
      %p98 = scmp.ne.s32.totalorder %s93, %s95
      %p99 = scmp.eq.s32.totalorder %s17, 0
      %p100 = por %p98, %p99
      %p101 = scmp.ne.s32.totalorder %s93, %s95
      %p102 = scmp.eq.s32.totalorder %s22, 1
      %p103 = por %p101, %p102
      %p104 = scmp.ne.s32.totalorder %s95, %s96
      %p105 = scmp.eq.s32.totalorder %s22, 0
      %p106 = por %p104, %p105
      %p107 = scmp.ne.s32.totalorder %s95, %s96
      %p108 = scmp.eq.s32.totalorder %s23, 1
      %p109 = por %p107, %p108
      %p111 = scmp.ne.s32.totalorder %s96, %s110
      %p112 = scmp.eq.s32.totalorder %s23, 0
      %p113 = por %p111, %p112
      %s115 = sadd.s32 %s114, 1
      %p118 = scmp.eq.s32.totalorder %s17, 1
      %p119 = scmp.ne.s32.totalorder %s114, %s116
      %p120 = scmp.eq.s32.totalorder %s17, 0
      %p121 = por %p119, %p120
      %p122 = scmp.ne.s32.totalorder %s114, %s116
      %p123 = scmp.eq.s32.totalorder %s22, 1
      %p124 = por %p122, %p123
      %p125 = scmp.ne.s32.totalorder %s116, %s117
      %p126 = scmp.eq.s32.totalorder %s22, 0
      %p127 = por %p125, %p126
      %p128 = scmp.ne.s32.totalorder %s116, %s117
      %p129 = scmp.eq.s32.totalorder %s23, 1
      %p130 = por %p128, %p129
      %p132 = scmp.ne.s32.totalorder %s117, %s131
      %p133 = scmp.eq.s32.totalorder %s23, 0
      %p134 = por %p132, %p133
      %s136 = sadd.s32 %s135, 1
      %p139 = scmp.eq.s32.totalorder %s17, 1
      %p140 = scmp.ne.s32.totalorder %s135, %s137
      %p141 = scmp.eq.s32.totalorder %s17, 0
      %p142 = por %p140, %p141
      %p143 = scmp.ne.s32.totalorder %s135, %s137
      %p144 = scmp.eq.s32.totalorder %s22, 1
      %p145 = por %p143, %p144
      %p146 = scmp.ne.s32.totalorder %s137, %s138
      %p147 = scmp.eq.s32.totalorder %s22, 0
      %p148 = por %p146, %p147
      %p149 = scmp.ne.s32.totalorder %s137, %s138
      %p150 = scmp.eq.s32.totalorder %s23, 1
      %p151 = por %p149, %p150
      %p153 = scmp.ne.s32.totalorder %s138, %s152
      %p154 = scmp.eq.s32.totalorder %s23, 0
      %p155 = por %p153, %p154
      %s157 = sadd.s32 %s156, 1
      %p160 = scmp.eq.s32.totalorder %s17, 1
      %p161 = scmp.ne.s32.totalorder %s156, %s158
      %p162 = scmp.eq.s32.totalorder %s17, 0
      %p163 = por %p161, %p162
      %p164 = scmp.ne.s32.totalorder %s156, %s158
      %p165 = scmp.eq.s32.totalorder %s22, 1
      %p166 = por %p164, %p165
      %p167 = scmp.ne.s32.totalorder %s158, %s159
      %p168 = scmp.eq.s32.totalorder %s22, 0
      %p169 = por %p167, %p168
      %p170 = scmp.ne.s32.totalorder %s158, %s159
      %p171 = scmp.eq.s32.totalorder %s23, 1
      %p172 = por %p170, %p171
      %p174 = scmp.ne.s32.totalorder %s159, %s173
      %p175 = scmp.eq.s32.totalorder %s23, 0
      %p176 = por %p174, %p175
      %s178 = sadd.s32 %s177, 1
      %p181 = scmp.eq.s32.totalorder %s17, 1
      %p182 = scmp.ne.s32.totalorder %s177, %s179
      %p183 = scmp.eq.s32.totalorder %s17, 0
      %p184 = por %p182, %p183
      %p185 = scmp.ne.s32.totalorder %s177, %s179
      %p186 = scmp.eq.s32.totalorder %s22, 1
      %p187 = por %p185, %p186
      %p188 = scmp.ne.s32.totalorder %s179, %s180
      %p189 = scmp.eq.s32.totalorder %s22, 0
      %p190 = por %p188, %p189
      %p191 = scmp.ne.s32.totalorder %s179, %s180
      %p192 = scmp.eq.s32.totalorder %s23, 1
      %p193 = por %p191, %p192
      %p195 = scmp.ne.s32.totalorder %s180, %s194
      %p196 = scmp.eq.s32.totalorder %s23, 0
      %p197 = por %p195, %p196
      %s199 = sadd.s32 %s198, 1
      %p202 = scmp.eq.s32.totalorder %s17, 1
      %p203 = scmp.ne.s32.totalorder %s198, %s200
      %p204 = scmp.eq.s32.totalorder %s17, 0
      %p205 = por %p203, %p204
      %p206 = scmp.ne.s32.totalorder %s198, %s200
      %p207 = scmp.eq.s32.totalorder %s22, 1
      %p208 = por %p206, %p207
      %p209 = scmp.ne.s32.totalorder %s200, %s201
      %p210 = scmp.eq.s32.totalorder %s22, 0
      %p211 = por %p209, %p210
      %p212 = scmp.ne.s32.totalorder %s200, %s201
      %p213 = scmp.eq.s32.totalorder %s23, 1
      %p214 = por %p212, %p213
      %p216 = scmp.ne.s32.totalorder %s201, %s215
      %p217 = scmp.eq.s32.totalorder %s23, 0
      %p218 = por %p216, %p217
      %s219 = ssub.s32 %s17, %s24
      %p220 = scmp.eq.s32.totalorder %s219, 0
      %s222 = sadd.s32 %s221, 1
      %s223 = scalar_select %p220, %s221, %s222
      %p226 = pneg %p220
      %p227 = scmp.eq.s32.totalorder %s17, 1
      %p228 = por %p226, %p227
      %p229 = scmp.ne.s32.totalorder %s221, %s224
      %p230 = scmp.eq.s32.totalorder %s17, 0
      %p231 = por %p229, %p230
      %p232 = scmp.ne.s32.totalorder %s221, %s224
      %p233 = scmp.eq.s32.totalorder %s22, 1
      %p234 = por %p232, %p233
      %p235 = scmp.ne.s32.totalorder %s224, %s225
      %p236 = scmp.eq.s32.totalorder %s22, 0
      %p237 = por %p235, %p236
      %p238 = scmp.ne.s32.totalorder %s224, %s225
      %p239 = scmp.eq.s32.totalorder %s23, 1
      %p240 = por %p238, %p239
      %p242 = scmp.ne.s32.totalorder %s225, %s241
      %p243 = scmp.eq.s32.totalorder %s23, 0
      %p244 = por %p242, %p243
      %p245 = scmp.le.s32.totalorder 1, %s17
      %p246 = scmp.lt.s32.totalorder %s17, 3
      %p247 = pnand %p245, %p246
      %p248 = pneg %p247
      // Predicated region
      $region9: #{sae_forward.1} parent=5 // pred_check
        _
      $region10: #{sae_forward.1} parent=5 // pred_check_branch
        %250 = sbr.rel (%p247) target = $region12
      $region11: #{sae_forward.1} parent=5 // pred_region
        %s251 = ssub.s32 %s17, 1
        // Predicated region
        $region13: #{sae_forward.1} parent=11 // pred_check
          %p252 = pneg %p64
        $region14: #{sae_forward.1} parent=11 // pred_check_branch
          %254 = sbr.rel (%p252) target = $region16
        $region15: #{sae_forward.1} parent=11 // pred_region
          _
        $region16: #{sae_forward.1} parent=11 // pred_fallthru
          _
        // Predicated region
        $region17: #{sae_forward.1} parent=11 // pred_check
          %p255 = pneg %p85
        $region18: #{sae_forward.1} parent=11 // pred_check_branch
          %257 = sbr.rel (%p255) target = $region20
        $region19: #{sae_forward.1} parent=11 // pred_region
          _
        $region20: #{sae_forward.1} parent=11 // pred_fallthru
          _
        // Predicated region
        $region21: #{sae_forward.1} parent=11 // pred_check
          %p258 = pneg %p106
        $region22: #{sae_forward.1} parent=11 // pred_check_branch
          %260 = sbr.rel (%p258) target = $region24
        $region23: #{sae_forward.1} parent=11 // pred_region
          %s262 = ssub.s32 4096, 4096
          %263 = vsyncadd [#allocation4], %s262
          %s264 = sshll.u32 [#allocation3], 4
          %s265 = int_to_ptr.vmem [resolvable:$true] %s264
          %270 = dma.hbm_to_vmem [thread:$0]  %s3, 4096, %s265, [#allocation4], 128, 128, 8
        $region24: #{sae_forward.1} parent=11 // pred_fallthru
          _
        // Predicated region
        $region25: #{sae_forward.1} parent=11 // pred_check
          %p271 = pneg %p127
        $region26: #{sae_forward.1} parent=11 // pred_check_branch
          %273 = sbr.rel (%p271) target = $region28
        $region27: #{sae_forward.1} parent=11 // pred_region
          _
        $region28: #{sae_forward.1} parent=11 // pred_fallthru
          _
        // Predicated region
        $region29: #{sae_forward.1} parent=11 // pred_check
          %p274 = pneg %p148
        $region30: #{sae_forward.1} parent=11 // pred_check_branch
          %276 = sbr.rel (%p274) target = $region32
        $region31: #{sae_forward.1} parent=11 // pred_region
          %s278 = ssub.s32 4096, 4096
          %279 = vsyncadd [#allocation6], %s278
          %s280 = sshll.u32 [#allocation5], 4
          %s281 = int_to_ptr.vmem [resolvable:$true] %s280
          %286 = dma.hbm_to_vmem [thread:$0]  %s5, 4096, %s281, [#allocation6], 256, 256, 16
        $region32: #{sae_forward.1} parent=11 // pred_fallthru
          _
        // Predicated region
        $region33: #{sae_forward.1} parent=11 // pred_check
          %p287 = pneg %p169
        $region34: #{sae_forward.1} parent=11 // pred_check_branch
          %289 = sbr.rel (%p287) target = $region36
        $region35: #{sae_forward.1} parent=11 // pred_region
          _
        $region36: #{sae_forward.1} parent=11 // pred_fallthru
          _
        // Predicated region
        $region37: #{sae_forward.1} parent=11 // pred_check
          %p290 = pneg %p190
        $region38: #{sae_forward.1} parent=11 // pred_check_branch
          %292 = sbr.rel (%p290) target = $region40
        $region39: #{sae_forward.1} parent=11 // pred_region
          _
        $region40: #{sae_forward.1} parent=11 // pred_fallthru
          _
        // Predicated region
        $region41: #{sae_forward.1} parent=11 // pred_check
          %p293 = pneg %p211
        $region42: #{sae_forward.1} parent=11 // pred_check_branch
          %295 = sbr.rel (%p293) target = $region44
        $region43: #{sae_forward.1} parent=11 // pred_region
          _
        $region44: #{sae_forward.1} parent=11 // pred_fallthru
          _
      $region12: #{sae_forward.1} parent=5 // pred_fallthru
        _
      %p296 = scmp.lt.s32.totalorder %s17, 2
      // Predicated region
      $region45: #{sae_forward.1} parent=5 // pred_check
        %p297 = pneg %p296
      $region46: #{sae_forward.1} parent=5 // pred_check_branch
        %299 = sbr.rel (%p297) target = $region48
      $region47: #{sae_forward.1} parent=5 // pred_region
        // Predicated region
        $region49: #{sae_forward.1} parent=47 // pred_check
          %p300 = pneg %p37
        $region50: #{sae_forward.1} parent=47 // pred_check_branch
          %302 = sbr.rel (%p300) target = $region52
        $region51: #{sae_forward.1} parent=47 // pred_region
          %s303 = smul.u32 4, %s17
          %p304 = scmp.lt.s32.totalorder %s303, 7
          %s305 = scalar_select %p304, %s303, 7
          %s306 = smul.addr %s305, 8
          %s307 = scalar_lea.vmem %s0, %s306
          %s308 = smul.u32 4, %s17
        $region52: #{sae_forward.1} parent=47 // pred_fallthru
          _
      $region48: #{sae_forward.1} parent=5 // pred_fallthru
        _
      %p309 = scmp.le.s32.totalorder 1, %s17
      %p310 = scmp.lt.s32.totalorder %s17, 3
      %p311 = pnand %p309, %p310
      %p312 = pneg %p311
      // Predicated region
      $region53: #{sae_forward.1} parent=5 // pred_check
        _
      $region54: #{sae_forward.1} parent=5 // pred_check_branch
        %314 = sbr.rel (%p311) target = $region56
      $region55: #{sae_forward.1} parent=5 // pred_region
        %s315 = ssub.s32 %s17, 1
        // Predicated region
        $region57: #{sae_forward.1} parent=55 // pred_check
          %p316 = pneg %p106
        $region58: #{sae_forward.1} parent=55 // pred_check_branch
          %318 = sbr.rel (%p316) target = $region60
        $region59: #{sae_forward.1} parent=55 // pred_region
          %319 = dma.done [#allocation4], 4096
        $region60: #{sae_forward.1} parent=55 // pred_fallthru
          _
        // Predicated region
        $region61: #{sae_forward.1} parent=55 // pred_check
          %p320 = pneg %p148
        $region62: #{sae_forward.1} parent=55 // pred_check_branch
          %322 = sbr.rel (%p320) target = $region64
        $region63: #{sae_forward.1} parent=55 // pred_region
          %323 = dma.done [#allocation6], 4096
        $region64: #{sae_forward.1} parent=55 // pred_fallthru
          _
        %s324 = smul.u32 4, %s22
        %p325 = scmp.lt.s32.totalorder %s324, 7
        %s326 = scalar_select %p325, %s324, 7
        %s327 = smul.addr %s326, 8
        %s328 = scalar_lea.vmem %s0, %s327
        %p329 = pneg %p43
        %p330 = pneg %p40
        %p331 = pneg %p64
        %p332 = pneg %p61
        %p333 = pneg %p85
        %p334 = pneg %p82
        %p335 = pneg %p106
        %p336 = pneg %p103
        %p337 = pneg %p127
        %p338 = pneg %p124
        %p339 = pneg %p148
        %p340 = pneg %p145
        %p341 = pneg %p169
        %p342 = pneg %p166
        %p343 = pneg %p190
        %p344 = pneg %p187
        %p345 = pneg %p211
        %p346 = pneg %p208
        %p347 = pneg %p237
        %p348 = pneg %p234
        %s349 = smul.u32 4, %s22
        %p350 = scmp.lt.s32.totalorder %s349, 7
        %s351 = scalar_select %p350, %s349, 7
        %s352 = smul.addr %s351, 8
        %s353 = scalar_lea.vmem %s9, %s352
        %s354 = smul.u32 4, %s22
        %p355 = scmp.lt.s32.totalorder %s354, 7
        %s356 = scalar_select %p355, %s354, 7
        %s357 = smul.addr %s356, 8
        %s358 = scalar_lea.vmem %s0, %s357
        %s359 = smul.u32 4, %s22
        %s360 = smul.u32 4, %s22
        %p361 = scmp.lt.s32.totalorder %s360, 7
        %s362 = scalar_select %p361, %s360, 7
        %s363 = smul.addr %s362, 8
        %s364 = scalar_lea.vmem %s9, %s363
        %s365 = smul.u32 4, %s22
        %366 = vst [vmem:[#allocation2] sm:$0xff] 0.0
        %367 = vst [vmem:[#allocation2 + $0x8] sm:$0xff] 0.0
        %368 = vst [vmem:[#allocation2 + $0x10] sm:$0xff] 0.0
        %369 = vst [vmem:[#allocation2 + $0x18] sm:$0xff] 0.0
        %v370 = vld [vmem:[%s358] sm:$0xff]
        %v371 = vld [vmem:[%s358 + $0x8] sm:$0xff]
        %v372 = vld [vmem:[%s358 + $0x10] sm:$0xff]
        %v373 = vld [vmem:[%s358 + $0x18] sm:$0xff]
        %vm374 = vcmask 146432
        %375 = vst.msk [vmem:[#allocation2] sm:$0xff] %vm374, %v370
        %376 = vst.msk [vmem:[#allocation2 + $0x8] sm:$0xff] %vm374, %v371
        %377 = vst.msk [vmem:[#allocation2 + $0x10] sm:$0xff] %vm374, %v372
        %378 = vst.msk [vmem:[#allocation2 + $0x18] sm:$0xff] %vm374, %v373
        %v379 = vld [vmem:[#allocation2] sm:$0xff]
        %v380 = vld [vmem:[#allocation2 + $0x8] sm:$0xff]
        %v381 = vld [vmem:[#allocation2 + $0x10] sm:$0xff]
        %v382 = vld [vmem:[#allocation2 + $0x18] sm:$0xff]
        %v383 = vld [vmem:[%s1] sm:$0xff]
        %v384 = vld [vmem:[%s1 + $0x8] sm:$0xff]
        %v385 = vld [vmem:[%s1 + $0x10] sm:$0xff]
        %v386 = vld [vmem:[%s1 + $0x18] sm:$0xff]
        %v387 = vld [vmem:[%s1 + $0x20] sm:$0xff]
        %v388 = vld [vmem:[%s1 + $0x28] sm:$0xff]
        %v389 = vld [vmem:[%s1 + $0x30] sm:$0xff]
        %v390 = vld [vmem:[%s1 + $0x38] sm:$0xff]
        %v391 = vld [vmem:[%s1 + $0x40] sm:$0xff]
        %v392 = vld [vmem:[%s1 + $0x48] sm:$0xff]
        %v393 = vld [vmem:[%s1 + $0x50] sm:$0xff]
        %v394 = vld [vmem:[%s1 + $0x58] sm:$0xff]
        %v395 = vld [vmem:[%s1 + $0x60] sm:$0xff]
        %v396 = vld [vmem:[%s1 + $0x68] sm:$0xff]
        %v397 = vld [vmem:[%s1 + $0x70] sm:$0xff]
        %v398 = vld [vmem:[%s1 + $0x78] sm:$0xff]
        %v399 = vld [vmem:[%s1 + $0x80] sm:$0xff]
        %v400 = vld [vmem:[%s1 + $0x88] sm:$0xff]
        %v401 = vld [vmem:[%s1 + $0x90] sm:$0xff]
        %v402 = vld [vmem:[%s1 + $0x98] sm:$0xff]
        %v403 = vld [vmem:[%s1 + $0xa0] sm:$0xff]
        %v404 = vld [vmem:[%s1 + $0xa8] sm:$0xff]
        %v405 = vld [vmem:[%s1 + $0xb0] sm:$0xff]
        %v406 = vld [vmem:[%s1 + $0xb8] sm:$0xff]
        %v407 = vld [vmem:[%s1 + $0xc0] sm:$0xff]
        %v408 = vld [vmem:[%s1 + $0xc8] sm:$0xff]
        %v409 = vld [vmem:[%s1 + $0xd0] sm:$0xff]
        %v410 = vld [vmem:[%s1 + $0xd8] sm:$0xff]
        %v411 = vld [vmem:[%s1 + $0xe0] sm:$0xff]
        %v412 = vld [vmem:[%s1 + $0xe8] sm:$0xff]
        %v413 = vld [vmem:[%s1 + $0xf0] sm:$0xff]
        %v414 = vld [vmem:[%s1 + $0xf8] sm:$0xff]
        %v415 = vld [vmem:[%s2] sm:$0x3]
        %v417 = vlaneseq
        %v418 = vshrl.u32 %v417, 7
        %v419 = vsub.s32 0, %v418
        %v420 = vrot.slane %v415, %v419
        %v421 = vlaneseq
        %v422 = vshrl.u32 %v421, 7
        %v423 = vsub.s32 1, %v422
        %v424 = vrot.slane %v415, %v423
        %427 = vmatprep.subr.mxu0 %v384
        %428 = vmatpush1.msra.mxu0 %v383
        %429 = vmatprep.subr.mxu0 %v386
        %430 = vmatpush1.msra.mxu0 %v385
        %431 = vmatprep.subr.mxu0 %v388
        %432 = vmatpush1.msra.mxu0 %v387
        %433 = vmatprep.subr.mxu0 %v390
        %434 = vmatpush1.msra.mxu0 %v389
        %435 = vmatprep.subr.mxu0 %v392
        %436 = vmatpush1.msra.mxu0 %v391
        %437 = vmatprep.subr.mxu0 %v394
        %438 = vmatpush1.msra.mxu0 %v393
        %439 = vmatprep.subr.mxu0 %v396
        %440 = vmatpush1.msra.mxu0 %v395
        %441 = vmatprep.subr.mxu0 %v398
        %442 = vmatpush1.msra.mxu0 %v397
        %443 = vmatprep.subr.mxu0 %v400
        %444 = vmatpush1.msra.mxu0 %v399
        %445 = vmatprep.subr.mxu0 %v402
        %446 = vmatpush1.msra.mxu0 %v401
        %447 = vmatprep.subr.mxu0 %v404
        %448 = vmatpush1.msra.mxu0 %v403
        %449 = vmatprep.subr.mxu0 %v406
        %450 = vmatpush1.msra.mxu0 %v405
        %451 = vmatprep.subr.mxu0 %v408
        %452 = vmatpush1.msra.mxu0 %v407
        %453 = vmatprep.subr.mxu0 %v410
        %454 = vmatpush1.msra.mxu0 %v409
        %455 = vmatprep.subr.mxu0 %v412
        %456 = vmatpush1.msra.mxu0 %v411
        %457 = vmatprep.subr.mxu0 %v414
        %458 = vmatpush1.msra.mxu0 %v413
        %459 = vmatprep.subr.mxu0 0.0
        %460 = vmatpush1.msra.mxu0 0.0
        %461 = vmatprep.subr.mxu0 0.0
        %462 = vmatpush1.msra.mxu0 0.0
        %463 = vmatprep.subr.mxu0 0.0
        %464 = vmatpush1.msra.mxu0 0.0
        %465 = vmatprep.subr.mxu0 0.0
        %466 = vmatpush1.msra.mxu0 0.0
        %467 = vmatprep.subr.mxu0 0.0
        %468 = vmatpush1.msra.mxu0 0.0
        %469 = vmatprep.subr.mxu0 0.0
        %470 = vmatpush1.msra.mxu0 0.0
        %471 = vmatprep.subr.mxu0 0.0
        %472 = vmatpush1.msra.mxu0 0.0
        %473 = vmatprep.subr.mxu0 0.0
        %474 = vmatpush1.msra.mxu0 0.0
        %475 = vmatprep.subr.mxu0 0.0
        %476 = vmatpush1.msra.mxu0 0.0
        %477 = vmatprep.subr.mxu0 0.0
        %478 = vmatpush1.msra.mxu0 0.0
        %479 = vmatprep.subr.mxu0 0.0
        %480 = vmatpush1.msra.mxu0 0.0
        %481 = vmatprep.subr.mxu0 0.0
        %482 = vmatpush1.msra.mxu0 0.0
        %483 = vmatprep.subr.mxu0 0.0
        %484 = vmatpush1.msra.mxu0 0.0
        %485 = vmatprep.subr.mxu0 0.0
        %486 = vmatpush1.msra.mxu0 0.0
        %487 = vmatprep.subr.mxu0 0.0
        %488 = vmatpush1.msra.mxu0 0.0
        %489 = vmatprep.subr.mxu0 0.0
        %490 = vmatpush1.msra.mxu0 0.0
        %491 = vmatprep.mubr.f32.mxu0 0.0
        %492 = vmatmul.mubr.f32.gmra.mrb[0].mxu0 %v379
        %v493 = vpop.f32.mrb[0].mxu0
        %v494 = vadd.f32 %v420, %v493
        %v495 = vpop.f32.mrb[0].mxu0
        %v496 = vadd.f32 %v424, %v495
        %497 = vmatprep.mubr.f32.mxu0 0.0
        %498 = vmatmul.mubr.f32.gmra.mrb[0].mxu0 %v380
        %v499 = vpop.f32.mrb[0].mxu0
        %v500 = vadd.f32 %v420, %v499
        %v501 = vpop.f32.mrb[0].mxu0
        %v502 = vadd.f32 %v424, %v501
        %503 = vmatprep.mubr.f32.mxu0 0.0
        %504 = vmatmul.mubr.f32.gmra.mrb[0].mxu0 %v381
        %v505 = vpop.f32.mrb[0].mxu0
        %v506 = vadd.f32 %v420, %v505
        %v507 = vpop.f32.mrb[0].mxu0
        %v508 = vadd.f32 %v424, %v507
        %509 = vmatprep.mubr.f32.mxu0 0.0
        %510 = vmatmul.mubr.f32.gmra.mrb[0].mxu0 %v382
        %v511 = vpop.f32.mrb[0].mxu0
        %v512 = vadd.f32 %v420, %v511
        %v513 = vpop.f32.mrb[0].mxu0
        %v514 = vadd.f32 %v424, %v513
        %515 = vdwg.mxu0
        %v516 = vmax.f32 %v494, 0.0
        %v517 = vmax.f32 %v496, 0.0
        %v518 = vmax.f32 %v500, 0.0
        %v519 = vmax.f32 %v502, 0.0
        %v520 = vmax.f32 %v506, 0.0
        %v521 = vmax.f32 %v508, 0.0
        %v522 = vmax.f32 %v512, 0.0
        %v523 = vmax.f32 %v514, 0.0
        %v524 = vld [vmem:[#allocation3] sm:$0xff]
        %v525 = vld [vmem:[#allocation3 + $0x8] sm:$0xff]
        %v526 = vld [vmem:[#allocation3 + $0x10] sm:$0xff]
        %v527 = vld [vmem:[#allocation3 + $0x18] sm:$0xff]
        %v528 = vld [vmem:[#allocation3 + $0x20] sm:$0xff]
        %v529 = vld [vmem:[#allocation3 + $0x28] sm:$0xff]
        %v530 = vld [vmem:[#allocation3 + $0x30] sm:$0xff]
        %v531 = vld [vmem:[#allocation3 + $0x38] sm:$0xff]
        %v532 = vld [vmem:[#allocation3 + $0x40] sm:$0xff]
        %v533 = vld [vmem:[#allocation3 + $0x48] sm:$0xff]
        %v534 = vld [vmem:[#allocation3 + $0x50] sm:$0xff]
        %v535 = vld [vmem:[#allocation3 + $0x58] sm:$0xff]
        %v536 = vld [vmem:[#allocation3 + $0x60] sm:$0xff]
        %v537 = vld [vmem:[#allocation3 + $0x68] sm:$0xff]
        %v538 = vld [vmem:[#allocation3 + $0x70] sm:$0xff]
        %v539 = vld [vmem:[#allocation3 + $0x78] sm:$0xff]
        %v540 = vld [vmem:[#allocation3 + $0x80] sm:$0xff]
        %v541 = vld [vmem:[#allocation3 + $0x88] sm:$0xff]
        %v542 = vld [vmem:[#allocation3 + $0x90] sm:$0xff]
        %v543 = vld [vmem:[#allocation3 + $0x98] sm:$0xff]
        %v544 = vld [vmem:[#allocation3 + $0xa0] sm:$0xff]
        %v545 = vld [vmem:[#allocation3 + $0xa8] sm:$0xff]
        %v546 = vld [vmem:[#allocation3 + $0xb0] sm:$0xff]
        %v547 = vld [vmem:[#allocation3 + $0xb8] sm:$0xff]
        %v548 = vld [vmem:[#allocation3 + $0xc0] sm:$0xff]
        %v549 = vld [vmem:[#allocation3 + $0xc8] sm:$0xff]
        %v550 = vld [vmem:[#allocation3 + $0xd0] sm:$0xff]
        %v551 = vld [vmem:[#allocation3 + $0xd8] sm:$0xff]
        %v552 = vld [vmem:[#allocation3 + $0xe0] sm:$0xff]
        %v553 = vld [vmem:[#allocation3 + $0xe8] sm:$0xff]
        %v554 = vld [vmem:[#allocation3 + $0xf0] sm:$0xff]
        %v555 = vld [vmem:[#allocation3 + $0xf8] sm:$0xff]
        %v556 = vld [vmem:[%s4] sm:$0x1]
        %v558 = vlaneseq
        %v559 = vshrl.u32 %v558, 7
        %v560 = vsub.s32 0, %v559
        %v561 = vrot.slane %v556, %v560
        %563 = vmatprep.subr.mxu0 0.0
        %564 = vmatpush1.msra.mxu0 %v524
        %565 = vmatprep.subr.mxu0 0.0
        %566 = vmatpush1.msra.mxu0 %v525
        %567 = vmatprep.subr.mxu0 0.0
        %568 = vmatpush1.msra.mxu0 %v526
        %569 = vmatprep.subr.mxu0 0.0
        %570 = vmatpush1.msra.mxu0 %v527
        %571 = vmatprep.subr.mxu0 0.0
        %572 = vmatpush1.msra.mxu0 %v528
        %573 = vmatprep.subr.mxu0 0.0
        %574 = vmatpush1.msra.mxu0 %v529
        %575 = vmatprep.subr.mxu0 0.0
        %576 = vmatpush1.msra.mxu0 %v530
        %577 = vmatprep.subr.mxu0 0.0
        %578 = vmatpush1.msra.mxu0 %v531
        %579 = vmatprep.subr.mxu0 0.0
        %580 = vmatpush1.msra.mxu0 %v532
        %581 = vmatprep.subr.mxu0 0.0
        %582 = vmatpush1.msra.mxu0 %v533
        %583 = vmatprep.subr.mxu0 0.0
        %584 = vmatpush1.msra.mxu0 %v534
        %585 = vmatprep.subr.mxu0 0.0
        %586 = vmatpush1.msra.mxu0 %v535
        %587 = vmatprep.subr.mxu0 0.0
        %588 = vmatpush1.msra.mxu0 %v536
        %589 = vmatprep.subr.mxu0 0.0
        %590 = vmatpush1.msra.mxu0 %v537
        %591 = vmatprep.subr.mxu0 0.0
        %592 = vmatpush1.msra.mxu0 %v538
        %593 = vmatprep.subr.mxu0 0.0
        %594 = vmatpush1.msra.mxu0 %v539
        %595 = vmatprep.subr.mxu0 0.0
        %596 = vmatpush1.msra.mxu0 %v540
        %597 = vmatprep.subr.mxu0 0.0
        %598 = vmatpush1.msra.mxu0 %v541
        %599 = vmatprep.subr.mxu0 0.0
        %600 = vmatpush1.msra.mxu0 %v542
        %601 = vmatprep.subr.mxu0 0.0
        %602 = vmatpush1.msra.mxu0 %v543
        %603 = vmatprep.subr.mxu0 0.0
        %604 = vmatpush1.msra.mxu0 %v544
        %605 = vmatprep.subr.mxu0 0.0
        %606 = vmatpush1.msra.mxu0 %v545
        %607 = vmatprep.subr.mxu0 0.0
        %608 = vmatpush1.msra.mxu0 %v546
        %609 = vmatprep.subr.mxu0 0.0
        %610 = vmatpush1.msra.mxu0 %v547
        %611 = vmatprep.subr.mxu0 0.0
        %612 = vmatpush1.msra.mxu0 %v548
        %613 = vmatprep.subr.mxu0 0.0
        %614 = vmatpush1.msra.mxu0 %v549
        %615 = vmatprep.subr.mxu0 0.0
        %616 = vmatpush1.msra.mxu0 %v550
        %617 = vmatprep.subr.mxu0 0.0
        %618 = vmatpush1.msra.mxu0 %v551
        %619 = vmatprep.subr.mxu0 0.0
        %620 = vmatpush1.msra.mxu0 %v552
        %621 = vmatprep.subr.mxu0 0.0
        %622 = vmatpush1.msra.mxu0 %v553
        %623 = vmatprep.subr.mxu0 0.0
        %624 = vmatpush1.msra.mxu0 %v554
        %625 = vmatprep.subr.mxu0 0.0
        %626 = vmatpush1.msra.mxu0 %v555
        %627 = vmatprep.mubr.f32.mxu0 %v517
        %628 = vmatmul.mubr.f32.gmra.mrb[0].mxu0 %v516
        %v629 = vpop.f32.mrb[0].mxu0
        %v630 = vadd.f32 %v561, %v629
        %v631 = vpop.f32.mrb[0].mxu0
        %632 = vmatprep.mubr.f32.mxu0 %v519
        %633 = vmatmul.mubr.f32.gmra.mrb[0].mxu0 %v518
        %v634 = vpop.f32.mrb[0].mxu0
        %v635 = vadd.f32 %v561, %v634
        %v636 = vpop.f32.mrb[0].mxu0
        %637 = vmatprep.mubr.f32.mxu0 %v521
        %638 = vmatmul.mubr.f32.gmra.mrb[0].mxu0 %v520
        %v639 = vpop.f32.mrb[0].mxu0
        %v640 = vadd.f32 %v561, %v639
        %v641 = vpop.f32.mrb[0].mxu0
        %642 = vmatprep.mubr.f32.mxu0 %v523
        %643 = vmatmul.mubr.f32.gmra.mrb[0].mxu0 %v522
        %v644 = vpop.f32.mrb[0].mxu0
        %v645 = vadd.f32 %v561, %v644
        %v646 = vpop.f32.mrb[0].mxu0
        %647 = vdwg.mxu0
        %v648 = vmax.f32 %v630, 0.0
        %v649 = vmax.f32 %v635, 0.0
        %v650 = vmax.f32 %v640, 0.0
        %v651 = vmax.f32 %v645, 0.0
        %v652 = vld [vmem:[#allocation5] sm:$0xff]
        %v653 = vld [vmem:[#allocation5 + $0x8] sm:$0xff]
        %v654 = vld [vmem:[#allocation5 + $0x10] sm:$0xff]
        %v655 = vld [vmem:[#allocation5 + $0x18] sm:$0xff]
        %v656 = vld [vmem:[#allocation5 + $0x20] sm:$0xff]
        %v657 = vld [vmem:[#allocation5 + $0x28] sm:$0xff]
        %v658 = vld [vmem:[#allocation5 + $0x30] sm:$0xff]
        %v659 = vld [vmem:[#allocation5 + $0x38] sm:$0xff]
        %v660 = vld [vmem:[#allocation5 + $0x40] sm:$0xff]
        %v661 = vld [vmem:[#allocation5 + $0x48] sm:$0xff]
        %v662 = vld [vmem:[#allocation5 + $0x50] sm:$0xff]
        %v663 = vld [vmem:[#allocation5 + $0x58] sm:$0xff]
        %v664 = vld [vmem:[#allocation5 + $0x60] sm:$0xff]
        %v665 = vld [vmem:[#allocation5 + $0x68] sm:$0xff]
        %v666 = vld [vmem:[#allocation5 + $0x70] sm:$0xff]
        %v667 = vld [vmem:[#allocation5 + $0x78] sm:$0xff]
        %v668 = vld [vmem:[#allocation5 + $0x80] sm:$0xff]
        %v669 = vld [vmem:[#allocation5 + $0x88] sm:$0xff]
        %v670 = vld [vmem:[#allocation5 + $0x90] sm:$0xff]
        %v671 = vld [vmem:[#allocation5 + $0x98] sm:$0xff]
        %v672 = vld [vmem:[#allocation5 + $0xa0] sm:$0xff]
        %v673 = vld [vmem:[#allocation5 + $0xa8] sm:$0xff]
        %v674 = vld [vmem:[#allocation5 + $0xb0] sm:$0xff]
        %v675 = vld [vmem:[#allocation5 + $0xb8] sm:$0xff]
        %v676 = vld [vmem:[#allocation5 + $0xc0] sm:$0xff]
        %v677 = vld [vmem:[#allocation5 + $0xc8] sm:$0xff]
        %v678 = vld [vmem:[#allocation5 + $0xd0] sm:$0xff]
        %v679 = vld [vmem:[#allocation5 + $0xd8] sm:$0xff]
        %v680 = vld [vmem:[#allocation5 + $0xe0] sm:$0xff]
        %v681 = vld [vmem:[#allocation5 + $0xe8] sm:$0xff]
        %v682 = vld [vmem:[#allocation5 + $0xf0] sm:$0xff]
        %v683 = vld [vmem:[#allocation5 + $0xf8] sm:$0xff]
        %v684 = vld [vmem:[%s6] sm:$0x3]
        %v686 = vlaneseq
        %v687 = vshrl.u32 %v686, 7
        %v688 = vsub.s32 0, %v687
        %v689 = vrot.slane %v684, %v688
        %v690 = vlaneseq
        %v691 = vshrl.u32 %v690, 7
        %v692 = vsub.s32 1, %v691
        %v693 = vrot.slane %v684, %v692
        %696 = vmatprep.subr.mxu0 %v653
        %697 = vmatpush1.msra.mxu0 %v652
        %698 = vmatprep.subr.mxu0 %v655
        %699 = vmatpush1.msra.mxu0 %v654
        %700 = vmatprep.subr.mxu0 %v657
        %701 = vmatpush1.msra.mxu0 %v656
        %702 = vmatprep.subr.mxu0 %v659
        %703 = vmatpush1.msra.mxu0 %v658
        %704 = vmatprep.subr.mxu0 %v661
        %705 = vmatpush1.msra.mxu0 %v660
        %706 = vmatprep.subr.mxu0 %v663
        %707 = vmatpush1.msra.mxu0 %v662
        %708 = vmatprep.subr.mxu0 %v665
        %709 = vmatpush1.msra.mxu0 %v664
        %710 = vmatprep.subr.mxu0 %v667
        %711 = vmatpush1.msra.mxu0 %v666
        %712 = vmatprep.subr.mxu0 %v669
        %713 = vmatpush1.msra.mxu0 %v668
        %714 = vmatprep.subr.mxu0 %v671
        %715 = vmatpush1.msra.mxu0 %v670
        %716 = vmatprep.subr.mxu0 %v673
        %717 = vmatpush1.msra.mxu0 %v672
        %718 = vmatprep.subr.mxu0 %v675
        %719 = vmatpush1.msra.mxu0 %v674
        %720 = vmatprep.subr.mxu0 %v677
        %721 = vmatpush1.msra.mxu0 %v676
        %722 = vmatprep.subr.mxu0 %v679
        %723 = vmatpush1.msra.mxu0 %v678
        %724 = vmatprep.subr.mxu0 %v681
        %725 = vmatpush1.msra.mxu0 %v680
        %726 = vmatprep.subr.mxu0 %v683
        %727 = vmatpush1.msra.mxu0 %v682
        %728 = vmatprep.subr.mxu0 0.0
        %729 = vmatpush1.msra.mxu0 0.0
        %730 = vmatprep.subr.mxu0 0.0
        %731 = vmatpush1.msra.mxu0 0.0
        %732 = vmatprep.subr.mxu0 0.0
        %733 = vmatpush1.msra.mxu0 0.0
        %734 = vmatprep.subr.mxu0 0.0
        %735 = vmatpush1.msra.mxu0 0.0
        %736 = vmatprep.subr.mxu0 0.0
        %737 = vmatpush1.msra.mxu0 0.0
        %738 = vmatprep.subr.mxu0 0.0
        %739 = vmatpush1.msra.mxu0 0.0
        %740 = vmatprep.subr.mxu0 0.0
        %741 = vmatpush1.msra.mxu0 0.0
        %742 = vmatprep.subr.mxu0 0.0
        %743 = vmatpush1.msra.mxu0 0.0
        %744 = vmatprep.subr.mxu0 0.0
        %745 = vmatpush1.msra.mxu0 0.0
        %746 = vmatprep.subr.mxu0 0.0
        %747 = vmatpush1.msra.mxu0 0.0
        %748 = vmatprep.subr.mxu0 0.0
        %749 = vmatpush1.msra.mxu0 0.0
        %750 = vmatprep.subr.mxu0 0.0
        %751 = vmatpush1.msra.mxu0 0.0
        %752 = vmatprep.subr.mxu0 0.0
        %753 = vmatpush1.msra.mxu0 0.0
        %754 = vmatprep.subr.mxu0 0.0
        %755 = vmatpush1.msra.mxu0 0.0
        %756 = vmatprep.subr.mxu0 0.0
        %757 = vmatpush1.msra.mxu0 0.0
        %758 = vmatprep.subr.mxu0 0.0
        %759 = vmatpush1.msra.mxu0 0.0
        %760 = vmatprep.mubr.f32.mxu0 0.0
        %761 = vmatmul.mubr.f32.gmra.mrb[0].mxu0 %v648
        %v762 = vpop.f32.mrb[0].mxu0
        %v763 = vadd.f32 %v689, %v762
        %v764 = vpop.f32.mrb[0].mxu0
        %v765 = vadd.f32 %v693, %v764
        %766 = vmatprep.mubr.f32.mxu0 0.0
        %767 = vmatmul.mubr.f32.gmra.mrb[0].mxu0 %v649
        %v768 = vpop.f32.mrb[0].mxu0
        %v769 = vadd.f32 %v689, %v768
        %v770 = vpop.f32.mrb[0].mxu0
        %v771 = vadd.f32 %v693, %v770
        %772 = vmatprep.mubr.f32.mxu0 0.0
        %773 = vmatmul.mubr.f32.gmra.mrb[0].mxu0 %v650
        %v774 = vpop.f32.mrb[0].mxu0
        %v775 = vadd.f32 %v689, %v774
        %v776 = vpop.f32.mrb[0].mxu0
        %v777 = vadd.f32 %v693, %v776
        %778 = vmatprep.mubr.f32.mxu0 0.0
        %779 = vmatmul.mubr.f32.gmra.mrb[0].mxu0 %v651
        %v780 = vpop.f32.mrb[0].mxu0
        %v781 = vadd.f32 %v689, %v780
        %v782 = vpop.f32.mrb[0].mxu0
        %v783 = vadd.f32 %v693, %v782
        %784 = vdwg.mxu0
        %v785 = vmax.f32 %v763, 0.0
        %v786 = vmax.f32 %v765, 0.0
        %v787 = vmax.f32 %v769, 0.0
        %v788 = vmax.f32 %v771, 0.0
        %v789 = vmax.f32 %v775, 0.0
        %v790 = vmax.f32 %v777, 0.0
        %v791 = vmax.f32 %v781, 0.0
        %v792 = vmax.f32 %v783, 0.0
        %v793 = vld [vmem:[%s7] sm:$0xff]
        %v794 = vld [vmem:[%s7 + $0x8] sm:$0xff]
        %v795 = vld [vmem:[%s7 + $0x10] sm:$0xff]
        %v796 = vld [vmem:[%s7 + $0x18] sm:$0xff]
        %v797 = vld [vmem:[%s7 + $0x20] sm:$0xff]
        %v798 = vld [vmem:[%s7 + $0x28] sm:$0xff]
        %v799 = vld [vmem:[%s7 + $0x30] sm:$0xff]
        %v800 = vld [vmem:[%s7 + $0x38] sm:$0xff]
        %v801 = vld [vmem:[%s7 + $0x40] sm:$0xff]
        %v802 = vld [vmem:[%s7 + $0x48] sm:$0xff]
        %v803 = vld [vmem:[%s7 + $0x50] sm:$0xff]
        %v804 = vld [vmem:[%s7 + $0x58] sm:$0xff]
        %v805 = vld [vmem:[%s7 + $0x60] sm:$0xff]
        %v806 = vld [vmem:[%s7 + $0x68] sm:$0xff]
        %v807 = vld [vmem:[%s7 + $0x70] sm:$0xff]
        %v808 = vld [vmem:[%s7 + $0x78] sm:$0xff]
        %v809 = vld [vmem:[%s7 + $0x80] sm:$0xff]
        %v810 = vld [vmem:[%s7 + $0x88] sm:$0xff]
        %v811 = vld [vmem:[%s7 + $0x90] sm:$0xff]
        %v812 = vld [vmem:[%s7 + $0x98] sm:$0xff]
        %v813 = vld [vmem:[%s7 + $0xa0] sm:$0xff]
        %v814 = vld [vmem:[%s7 + $0xa8] sm:$0xff]
        %v815 = vld [vmem:[%s7 + $0xb0] sm:$0xff]
        %v816 = vld [vmem:[%s7 + $0xb8] sm:$0xff]
        %v817 = vld [vmem:[%s7 + $0xc0] sm:$0xff]
        %v818 = vld [vmem:[%s7 + $0xc8] sm:$0xff]
        %v819 = vld [vmem:[%s7 + $0xd0] sm:$0xff]
        %v820 = vld [vmem:[%s7 + $0xd8] sm:$0xff]
        %v821 = vld [vmem:[%s7 + $0xe0] sm:$0xff]
        %v822 = vld [vmem:[%s7 + $0xe8] sm:$0xff]
        %v823 = vld [vmem:[%s7 + $0xf0] sm:$0xff]
        %v824 = vld [vmem:[%s7 + $0xf8] sm:$0xff]
        %v825 = vld [vmem:[%s8] sm:$0x1]
        %v827 = vlaneseq
        %v828 = vshrl.u32 %v827, 7
        %v829 = vsub.s32 0, %v828
        %v830 = vrot.slane %v825, %v829
        %832 = vmatprep.subr.mxu0 0.0
        %833 = vmatpush1.msra.mxu0 %v793
        %834 = vmatprep.subr.mxu0 0.0
        %835 = vmatpush1.msra.mxu0 %v794
        %836 = vmatprep.subr.mxu0 0.0
        %837 = vmatpush1.msra.mxu0 %v795
        %838 = vmatprep.subr.mxu0 0.0
        %839 = vmatpush1.msra.mxu0 %v796
        %840 = vmatprep.subr.mxu0 0.0
        %841 = vmatpush1.msra.mxu0 %v797
        %842 = vmatprep.subr.mxu0 0.0
        %843 = vmatpush1.msra.mxu0 %v798
        %844 = vmatprep.subr.mxu0 0.0
        %845 = vmatpush1.msra.mxu0 %v799
        %846 = vmatprep.subr.mxu0 0.0
        %847 = vmatpush1.msra.mxu0 %v800
        %848 = vmatprep.subr.mxu0 0.0
        %849 = vmatpush1.msra.mxu0 %v801
        %850 = vmatprep.subr.mxu0 0.0
        %851 = vmatpush1.msra.mxu0 %v802
        %852 = vmatprep.subr.mxu0 0.0
        %853 = vmatpush1.msra.mxu0 %v803
        %854 = vmatprep.subr.mxu0 0.0
        %855 = vmatpush1.msra.mxu0 %v804
        %856 = vmatprep.subr.mxu0 0.0
        %857 = vmatpush1.msra.mxu0 %v805
        %858 = vmatprep.subr.mxu0 0.0
        %859 = vmatpush1.msra.mxu0 %v806
        %860 = vmatprep.subr.mxu0 0.0
        %861 = vmatpush1.msra.mxu0 %v807
        %862 = vmatprep.subr.mxu0 0.0
        %863 = vmatpush1.msra.mxu0 %v808
        %864 = vmatprep.subr.mxu0 0.0
        %865 = vmatpush1.msra.mxu0 %v809
        %866 = vmatprep.subr.mxu0 0.0
        %867 = vmatpush1.msra.mxu0 %v810
        %868 = vmatprep.subr.mxu0 0.0
        %869 = vmatpush1.msra.mxu0 %v811
        %870 = vmatprep.subr.mxu0 0.0
        %871 = vmatpush1.msra.mxu0 %v812
        %872 = vmatprep.subr.mxu0 0.0
        %873 = vmatpush1.msra.mxu0 %v813
        %874 = vmatprep.subr.mxu0 0.0
        %875 = vmatpush1.msra.mxu0 %v814
        %876 = vmatprep.subr.mxu0 0.0
        %877 = vmatpush1.msra.mxu0 %v815
        %878 = vmatprep.subr.mxu0 0.0
        %879 = vmatpush1.msra.mxu0 %v816
        %880 = vmatprep.subr.mxu0 0.0
        %881 = vmatpush1.msra.mxu0 %v817
        %882 = vmatprep.subr.mxu0 0.0
        %883 = vmatpush1.msra.mxu0 %v818
        %884 = vmatprep.subr.mxu0 0.0
        %885 = vmatpush1.msra.mxu0 %v819
        %886 = vmatprep.subr.mxu0 0.0
        %887 = vmatpush1.msra.mxu0 %v820
        %888 = vmatprep.subr.mxu0 0.0
        %889 = vmatpush1.msra.mxu0 %v821
        %890 = vmatprep.subr.mxu0 0.0
        %891 = vmatpush1.msra.mxu0 %v822
        %892 = vmatprep.subr.mxu0 0.0
        %893 = vmatpush1.msra.mxu0 %v823
        %894 = vmatprep.subr.mxu0 0.0
        %895 = vmatpush1.msra.mxu0 %v824
        %896 = vmatprep.mubr.f32.mxu0 %v786
        %897 = vmatmul.mubr.f32.gmra.mrb[0].mxu0 %v785
        %v898 = vpop.f32.mrb[0].mxu0
        %v899 = vadd.f32 %v830, %v898
        %v900 = vpop.f32.mrb[0].mxu0
        %901 = vmatprep.mubr.f32.mxu0 %v788
        %902 = vmatmul.mubr.f32.gmra.mrb[0].mxu0 %v787
        %v903 = vpop.f32.mrb[0].mxu0
        %v904 = vadd.f32 %v830, %v903
        %v905 = vpop.f32.mrb[0].mxu0
        %906 = vmatprep.mubr.f32.mxu0 %v790
        %907 = vmatmul.mubr.f32.gmra.mrb[0].mxu0 %v789
        %v908 = vpop.f32.mrb[0].mxu0
        %v909 = vadd.f32 %v830, %v908
        %v910 = vpop.f32.mrb[0].mxu0
        %911 = vmatprep.mubr.f32.mxu0 %v792
        %912 = vmatmul.mubr.f32.gmra.mrb[0].mxu0 %v791
        %v913 = vpop.f32.mrb[0].mxu0
        %v914 = vadd.f32 %v830, %v913
        %v915 = vpop.f32.mrb[0].mxu0
        %916 = vdwg.mxu0
        %v917 = vmax.f32 %v899, 0.0
        %v918 = vmax.f32 %v904, 0.0
        %v919 = vmax.f32 %v909, 0.0
        %v920 = vmax.f32 %v914, 0.0
        %925 = vrot.lane.b32.xlu0 %v765, 1
        %v926 = vpop.permute.xlu0 %925
        %927 = vrot.lane.b32.xlu0 %v771, 1
        %v928 = vpop.permute.xlu0 %927
        %929 = vrot.lane.b32.xlu0 %v777, 1
        %v930 = vpop.permute.xlu0 %929
        %931 = vrot.lane.b32.xlu0 %v783, 1
        %v932 = vpop.permute.xlu0 %931
        %v937 = vsub.f32 %v765, %v926
        %v938 = vsub.f32 %v771, %v928
        %v939 = vsub.f32 %v777, %v930
        %v940 = vsub.f32 %v783, %v932
        %v941 = vmax.f32 %v937, 0.0
        %v942 = vmax.f32 %v938, 0.0
        %v943 = vmax.f32 %v939, 0.0
        %v944 = vmax.f32 %v940, 0.0
        %v945 = vand.u32 2147483647, %v937
        %v946 = vand.u32 2147483647, %v938
        %v947 = vand.u32 2147483647, %v939
        %v948 = vand.u32 2147483647, %v940
        %v949 = vsub.f32 0.0, %v945
        %v950 = vsub.f32 0.0, %v946
        %v951 = vsub.f32 0.0, %v947
        %v952 = vsub.f32 0.0, %v948
        %v953 = vmul.f32 %v949, 1.442695
        %v954 = vpow.pop %v953
        %v955 = vmul.f32 %v950, 1.442695
        %v956 = vpow.pop %v955
        %v957 = vmul.f32 %v951, 1.442695
        %v958 = vpow.pop %v957
        %v959 = vmul.f32 %v952, 1.442695
        %v960 = vpow.pop %v959
        %v961 = vadd.f32 %v954, 1.0
        %v962 = vlog2.pop %v961
        %v963 = vmul.f32 %v962, 0.6931472
        %v964 = vmul.f32 -0.5, %v954
        %v965 = vadd.f32 %v964, 1.0
        %v966 = vmul.f32 %v965, %v954
        %v967 = vand.u32 2147483647, %v954
        %vm968 = vcmp.lt.f32.partialorder %v967, 0.0004427343
        %v969 = vsel %vm968, %v966, %v963
        %v970 = vadd.f32 %v956, 1.0
        %v971 = vlog2.pop %v970
        %v972 = vmul.f32 %v971, 0.6931472
        %v973 = vmul.f32 -0.5, %v956
        %v974 = vadd.f32 %v973, 1.0
        %v975 = vmul.f32 %v974, %v956
        %v976 = vand.u32 2147483647, %v956
        %vm977 = vcmp.lt.f32.partialorder %v976, 0.0004427343
        %v978 = vsel %vm977, %v975, %v972
        %v979 = vadd.f32 %v958, 1.0
        %v980 = vlog2.pop %v979
        %v981 = vmul.f32 %v980, 0.6931472
        %v982 = vmul.f32 -0.5, %v958
        %v983 = vadd.f32 %v982, 1.0
        %v984 = vmul.f32 %v983, %v958
        %v985 = vand.u32 2147483647, %v958
        %vm986 = vcmp.lt.f32.partialorder %v985, 0.0004427343
        %v987 = vsel %vm986, %v984, %v981
        %v988 = vadd.f32 %v960, 1.0
        %v989 = vlog2.pop %v988
        %v990 = vmul.f32 %v989, 0.6931472
        %v991 = vmul.f32 -0.5, %v960
        %v992 = vadd.f32 %v991, 1.0
        %v993 = vmul.f32 %v992, %v960
        %v994 = vand.u32 2147483647, %v960
        %vm995 = vcmp.lt.f32.partialorder %v994, 0.0004427343
        %v996 = vsel %vm995, %v993, %v990
        %v997 = vadd.f32 %v941, %v969
        %v998 = vadd.f32 %v942, %v978
        %v999 = vadd.f32 %v943, %v987
        %v1000 = vadd.f32 %v944, %v996
        %v1001 = vsub.f32 0.0, %v997
        %v1002 = vsub.f32 0.0, %v998
        %v1003 = vsub.f32 0.0, %v999
        %v1004 = vsub.f32 0.0, %v1000
        %1005 = vrot.lane.b32.xlu0 %v765, 127
        %v1006 = vpop.permute.xlu0 %1005
        %1007 = vrot.lane.b32.xlu0 %v771, 127
        %v1008 = vpop.permute.xlu0 %1007
        %1009 = vrot.lane.b32.xlu0 %v777, 127
        %v1010 = vpop.permute.xlu0 %1009
        %1011 = vrot.lane.b32.xlu0 %v783, 127
        %v1012 = vpop.permute.xlu0 %1011
        %v1017 = vsub.f32 %v765, %v1006
        %v1018 = vsub.f32 %v771, %v1008
        %v1019 = vsub.f32 %v777, %v1010
        %v1020 = vsub.f32 %v783, %v1012
        %v1021 = vmax.f32 %v1017, 0.0
        %v1022 = vmax.f32 %v1018, 0.0
        %v1023 = vmax.f32 %v1019, 0.0
        %v1024 = vmax.f32 %v1020, 0.0
        %v1025 = vand.u32 2147483647, %v1017
        %v1026 = vand.u32 2147483647, %v1018
        %v1027 = vand.u32 2147483647, %v1019
        %v1028 = vand.u32 2147483647, %v1020
        %v1029 = vsub.f32 0.0, %v1025
        %v1030 = vsub.f32 0.0, %v1026
        %v1031 = vsub.f32 0.0, %v1027
        %v1032 = vsub.f32 0.0, %v1028
        %v1033 = vmul.f32 %v1029, 1.442695
        %v1034 = vpow.pop %v1033
        %v1035 = vmul.f32 %v1030, 1.442695
        %v1036 = vpow.pop %v1035
        %v1037 = vmul.f32 %v1031, 1.442695
        %v1038 = vpow.pop %v1037
        %v1039 = vmul.f32 %v1032, 1.442695
        %v1040 = vpow.pop %v1039
        %v1041 = vadd.f32 %v1034, 1.0
        %v1042 = vlog2.pop %v1041
        %v1043 = vmul.f32 %v1042, 0.6931472
        %v1044 = vmul.f32 -0.5, %v1034
        %v1045 = vadd.f32 %v1044, 1.0
        %v1046 = vmul.f32 %v1045, %v1034
        %v1047 = vand.u32 2147483647, %v1034
        %vm1048 = vcmp.lt.f32.partialorder %v1047, 0.0004427343
        %v1049 = vsel %vm1048, %v1046, %v1043
        %v1050 = vadd.f32 %v1036, 1.0
        %v1051 = vlog2.pop %v1050
        %v1052 = vmul.f32 %v1051, 0.6931472
        %v1053 = vmul.f32 -0.5, %v1036
        %v1054 = vadd.f32 %v1053, 1.0
        %v1055 = vmul.f32 %v1054, %v1036
        %v1056 = vand.u32 2147483647, %v1036
        %vm1057 = vcmp.lt.f32.partialorder %v1056, 0.0004427343
        %v1058 = vsel %vm1057, %v1055, %v1052
        %v1059 = vadd.f32 %v1038, 1.0
        %v1060 = vlog2.pop %v1059
        %v1061 = vmul.f32 %v1060, 0.6931472
        %v1062 = vmul.f32 -0.5, %v1038
        %v1063 = vadd.f32 %v1062, 1.0
        %v1064 = vmul.f32 %v1063, %v1038
        %v1065 = vand.u32 2147483647, %v1038
        %vm1066 = vcmp.lt.f32.partialorder %v1065, 0.0004427343
        %v1067 = vsel %vm1066, %v1064, %v1061
        %v1068 = vadd.f32 %v1040, 1.0
        %v1069 = vlog2.pop %v1068
        %v1070 = vmul.f32 %v1069, 0.6931472
        %v1071 = vmul.f32 -0.5, %v1040
        %v1072 = vadd.f32 %v1071, 1.0
        %v1073 = vmul.f32 %v1072, %v1040
        %v1074 = vand.u32 2147483647, %v1040
        %vm1075 = vcmp.lt.f32.partialorder %v1074, 0.0004427343
        %v1076 = vsel %vm1075, %v1073, %v1070
        %v1077 = vadd.f32 %v1021, %v1049
        %v1078 = vadd.f32 %v1022, %v1058
        %v1079 = vadd.f32 %v1023, %v1067
        %v1080 = vadd.f32 %v1024, %v1076
        %v1081 = vsub.f32 0.0, %v1077
        %v1082 = vsub.f32 0.0, %v1078
        %v1083 = vsub.f32 0.0, %v1079
        %v1084 = vsub.f32 0.0, %v1080
        %vm1085 = vcmask 261120
        %1086 = vst.msk [vmem:[%s364] sm:$0xff] %vm1085, %v917
        %1087 = vst.msk [vmem:[%s364 + $0x8] sm:$0xff] %vm1085, %v918
        %1088 = vst.msk [vmem:[%s364 + $0x10] sm:$0xff] %vm1085, %v919
        %1089 = vst.msk [vmem:[%s364 + $0x18] sm:$0xff] %vm1085, %v920
        %1094 = vrot.lane.b32.xlu0 %v1001, 55
        %v1095 = vpop.permute.xlu0 %1094
        %1096 = vrot.lane.b32.xlu0 %v1002, 55
        %v1097 = vpop.permute.xlu0 %1096
        %1098 = vrot.lane.b32.xlu0 %v1003, 55
        %v1099 = vpop.permute.xlu0 %1098
        %1100 = vrot.lane.b32.xlu0 %v1004, 55
        %v1101 = vpop.permute.xlu0 %1100
        %vm1106 = vcmask 203968
        %1107 = vst.msk [vmem:[%s364] sm:$0xff] %vm1106, %v1095
        %1108 = vst.msk [vmem:[%s364 + $0x8] sm:$0xff] %vm1106, %v1097
        %1109 = vst.msk [vmem:[%s364 + $0x10] sm:$0xff] %vm1106, %v1099
        %1110 = vst.msk [vmem:[%s364 + $0x18] sm:$0xff] %vm1106, %v1101
        %1115 = vrot.lane.b32.xlu0 %v1081, 57
        %v1116 = vpop.permute.xlu0 %1115
        %1117 = vrot.lane.b32.xlu0 %v1082, 57
        %v1118 = vpop.permute.xlu0 %1117
        %1119 = vrot.lane.b32.xlu0 %v1083, 57
        %v1120 = vpop.permute.xlu0 %1119
        %1121 = vrot.lane.b32.xlu0 %v1084, 57
        %v1122 = vpop.permute.xlu0 %1121
        %vm1127 = vcmask 212168
        %1128 = vst.msk [vmem:[%s364] sm:$0xff] %vm1127, %v1116
        %1129 = vst.msk [vmem:[%s364 + $0x8] sm:$0xff] %vm1127, %v1118
        %1130 = vst.msk [vmem:[%s364 + $0x10] sm:$0xff] %vm1127, %v1120
        %1131 = vst.msk [vmem:[%s364 + $0x18] sm:$0xff] %vm1127, %v1122
        %s1132 = smul.u32 4, %s22
        %p1133 = scmp.lt.s32.totalorder %s1132, 7
        %s1134 = scalar_select %p1133, %s1132, 7
        %s1135 = smul.addr %s1134, 8
        %s1136 = scalar_lea.vmem %s9, %s1135
        // Predicated region
        $region65: #{sae_forward.1} parent=55 // pred_check
          %p1137 = pneg %p234
        $region66: #{sae_forward.1} parent=55 // pred_check_branch
          %1139 = sbr.rel (%p1137) target = $region68
        $region67: #{sae_forward.1} parent=55 // pred_region
          %s1140 = smul.u32 4, %s22
        $region68: #{sae_forward.1} parent=55 // pred_fallthru
          _
      $region56: #{sae_forward.1} parent=5 // pred_fallthru
        _
      %p1141 = scmp.le.s32.totalorder 2, %s17
      // Predicated region
      $region69: #{sae_forward.1} parent=5 // pred_check
        %p1142 = pneg %p1141
      $region70: #{sae_forward.1} parent=5 // pred_check_branch
        %1144 = sbr.rel (%p1142) target = $region72
      $region71: #{sae_forward.1} parent=5 // pred_region
        %s1145 = ssub.s32 %s17, 2
        // Predicated region
        $region73: #{sae_forward.1} parent=71 // pred_check
          %p1146 = pneg %p240
        $region74: #{sae_forward.1} parent=71 // pred_check_branch
          %1148 = sbr.rel (%p1146) target = $region76
        $region75: #{sae_forward.1} parent=71 // pred_region
          %s1149 = smul.u32 4, %s23
          %p1150 = scmp.lt.s32.totalorder %s1149, 7
          %s1151 = scalar_select %p1150, %s1149, 7
          %s1152 = smul.addr %s1151, 8
          %s1153 = scalar_lea.vmem %s9, %s1152
        $region76: #{sae_forward.1} parent=71 // pred_fallthru
          _
      $region72: #{sae_forward.1} parent=5 // pred_fallthru
        _
    $region6: #{sae_forward.1} parent=1 // loop_footer
      %s21 = sadd.s32 1, %s17
    $region7: #{sae_forward.1} parent=1 // loop_footer_branch
      %16 = sbr.rel target = $region3
    $region8: #{sae_forward.1} parent=1 // loop_exit
      _
    %1154 = vsyncpa [#allocation4], 1
    %s1155 = scalar_lea.sflag [#allocation4], 1
    %1156 = vsyncpa %s1155, 1
    %1157 = vsyncpa [#allocation6], 1

</llo_original>
